<compile_context>
chip_gen: v6e
topology: v6e:2x2x1
jax: 0.10.0
libtpu: 0.0.40
codegen_flags: <defaults>
</compile_context>

<pallas_src>
import functools

import numpy as np
import jax
import jax.numpy as jnp
from jax.experimental import pallas as pl
from jax.experimental.pallas import tpu as pltpu


def _round_up(x: int, m: int) -> int:
    return ((x + m - 1) // m) * m


# ----------------------------------------------------------------------------
# Hardware queries (with conservative fallbacks so they can never crash).
# ----------------------------------------------------------------------------
def _vmem_capacity_bytes() -> int:
    try:
        return int(pltpu.get_tpu_info().vmem_capacity_bytes)
    except Exception:
        return 64 * 1024 * 1024            # v7x per-TC physical; conservative.


def _device_kind() -> str:
    try:
        return (jax.devices()[0].device_kind or "").lower()
    except Exception:
        return ""


def _num_tensorcores() -> int:
    """TensorCores that share one Pallas grid (megacore parts split 'parallel')."""
    kind = _device_kind()
    if any(s in kind for s in ("v7", "tpu7", "7x", "v4", "v5p")):
        return 2
    if "v5" in kind and "lite" not in kind and "v5e" not in kind:
        return 2                            # v5p reports "TPU v5"
    return 1


def _mxu_dim() -> int:
    kind = _device_kind()
    return 256 if any(s in kind for s in ("v6", "v7", "tpu7", "7x")) else 128


# ----------------------------------------------------------------------------
# Host glue: PIL-style antialiased bilinear resize expressed as a dense matrix.
# ----------------------------------------------------------------------------
@functools.lru_cache(maxsize=None)
def _pil_bilinear_weights(in_size: int, out_size: int) -> np.ndarray:
    """Row-stochastic (out_size, in_size) matrix matching PIL BILINEAR+antialias."""
    scale = in_size / out_size
    filterscale = max(scale, 1.0)           # antialias: widen kernel on downscale
    support = 1.0 * filterscale             # bilinear filter support = 1.0
    w_mat = np.zeros((out_size, in_size), dtype=np.float64)
    for i in range(out_size):
        center = (i + 0.5) * scale
        xmin = int(max(center - support + 0.5, 0.0))
        xmax = int(min(center + support + 0.5, float(in_size)))
        xs = np.arange(xmin, xmax)
        wgt = 1.0 - np.abs((xs + 0.5 - center) / filterscale)
        wgt = np.clip(wgt, 0.0, None)
        s = wgt.sum()
        if s > 0:
            wgt = wgt / s
        w_mat[i, xmin:xmax] = wgt
    return w_mat.astype(np.float32)


@functools.lru_cache(maxsize=None)
def _crop_folded_mats(h, w, resized_h, resized_w, top, left, th, tw, thp, twp,
                      w_dtype_name):
    """Crop folded into the resize matrices, zero-padded to lane-dense shapes.

    Returns (rh_c: (thp, h), rwt_c: (w, twp)) device arrays (cached)."""
    dtype = jnp.dtype(w_dtype_name)
    rh = _pil_bilinear_weights(h, resized_h)[top:top + th, :]        # (th, h)
    rw = _pil_bilinear_weights(w, resized_w)[left:left + tw, :]      # (tw, w)
    rh_p = np.zeros((thp, h), dtype=np.float32)
    rh_p[:th, :] = rh
    rwt_p = np.zeros((w, twp), dtype=np.float32)
    rwt_p[:, :tw] = rw.T
    return jnp.asarray(rh_p, dtype=dtype), jnp.asarray(rwt_p, dtype=dtype)


# ----------------------------------------------------------------------------
# Pallas kernel: one NC-block of planes, fused resize+crop via batched matmuls.
# Crop is already folded into rh/rwt; only the (thp, twp) lane-dense result is
# ever computed/stored.
# ----------------------------------------------------------------------------
def _resize_crop_kernel(x_ref, rh_ref, rwt_ref, o_ref, *, bblk, rows_first, batched):
    f32 = jnp.float32
    wdt = rh_ref.dtype                      # compute dtype of the matmul inputs
    rh = rh_ref[...]                        # (thp, h)
    rwt = rwt_ref[...]                      # (w, twp)
    thp, h = rh.shape
    w, twp = rwt.shape

    def plane(img):                         # (h, w) -> (thp, twp), f32 accumulate
        if rows_first:
            t = jnp.dot(rh, img, preferred_element_type=f32)              # (thp, w)
            return jnp.dot(t.astype(wdt), rwt, preferred_element_type=f32)
        t = jnp.dot(img, rwt, preferred_element_type=f32)                 # (h, twp)
        return jnp.dot(rh, t.astype(wdt), preferred_element_type=f32)

    if bblk == 1:
        o_ref[0] = plane(x_ref[0].astype(wdt)).astype(o_ref.dtype)
        return

    if not batched:
        # Fallback path (only used if the batched forms fail to lower on this
        # jax/libtpu combination): per-plane 2-D matmuls, aligned full stores.
        for b in range(bblk):
            o_ref[b] = plane(x_ref[b].astype(wdt)).astype(o_ref.dtype)
        return

    x = x_ref[...].astype(wdt)                                            # (bblk, h, w)
    rh_b = jnp.broadcast_to(rh[None], (bblk, thp, h))
    if rows_first:
        # Batched rh-side contraction, then ONE big lane-dense 2-D matmul
        # (M = bblk*thp fills the MXU; thp % 8 == 0 so the merge is aligned).
        t = jnp.einsum("bth,bhw->btw", rh_b, x, preferred_element_type=f32)
        t = t.astype(wdt).reshape(bblk * thp, w)
        out = jnp.dot(t, rwt, preferred_element_type=f32).reshape(bblk, thp, twp)
    elif h % 8 == 0:
        # ONE big 2-D matmul first (M = bblk*h, aligned merge), then batched rh.
        t = jnp.dot(x.reshape(bblk * h, w), rwt, preferred_element_type=f32)
        t = t.astype(wdt).reshape(bblk, h, twp)
        out = jnp.einsum("bth,bhw->btw", rh_b, t, preferred_element_type=f32)
    else:
        # Unaligned h: avoid a tile-crossing reshape, use two batched einsums.
        rwt_b = jnp.broadcast_to(rwt[None], (bblk, w, twp))
        t = jnp.einsum("bhw,bwt->bht", x, rwt_b, preferred_element_type=f32)
        out = jnp.einsum("bth,bhw->btw", rh_b, t.astype(wdt),
                         preferred_element_type=f32)
    o_ref[...] = out.astype(o_ref.dtype)


# ----------------------------------------------------------------------------
# Build (and cache) a jitted fused resize+crop for fixed shapes / dtypes.
# ----------------------------------------------------------------------------
@functools.lru_cache(maxsize=None)
def _make_resize_crop_fn(n, c, h, w, th, tw, in_dtype_name, w_dtype_name):
    nc = n * c
    thp = _round_up(th, 8)                  # sublane-aligned output rows
    twp = _round_up(tw, 128)                # lane-dense output columns
    in_isz = jnp.dtype(in_dtype_name).itemsize
    wsz = jnp.dtype(w_dtype_name).itemsize
    cap = _vmem_capacity_bytes()
    ntc = _num_tensorcores()

    # ---- block size: divisor of nc, sized from VMEM budget + pipelining target.
    weight_bytes = 2 * wsz * (thp * h + w * twp)          # worst case: double-buffered
    inter = max(thp * w, h * twp)                          # larger intermediate of orders
    per_plane = (2 * h * w * in_isz                        # double-buffered input block
                 + h * w * wsz                             # in-VMEM cast copy
                 + 3 * thp * twp * 4                       # 2x output block + result value
                 + inter * (4 + wsz)                       # intermediate (f32) + cast
                 + thp * h * wsz                           # broadcast rh for batched einsum
                 + w * twp * wsz)                          # broadcast rwt (unaligned path)
    budget = int(cap * 0.7) - weight_bytes - (4 << 20)
    max_vmem_bblk = max(1, budget // max(1, per_plane))
    target_bblk = max(1, (2 << 20) // max(1, h * w * in_isz))   # ~2 MiB input / step
    cap_bblk = int(max(1, min(8, target_bblk, max_vmem_bblk, nc)))
    # TODO(synk): planes that do not fit VMEM even at bblk=1 (e.g. 4K f32 images
    # on v7x's 64 MiB) would need an intra-plane reduction grid axis (w-tiling)
    # with an f32 accumulator in scratch; not implemented.

    divisors = [d for d in range(1, nc + 1) if nc % d == 0 and d <= cap_bblk]
    bblk = None
    for d in sorted(divisors, reverse=True):
        if ntc == 1 or nc < ntc or (nc // d) % ntc == 0:   # even TC load balance
            bblk = d
            break
    if bblk is None:
        bblk = max(divisors)
    nb = nc // bblk

    # ---- matmul order: MXU-tile-aware padded cost (128 on v5e, 256 on v6e/v7x).
    mx = _mxu_dim()
    def _mm(m, k, nn):
        return _round_up(m, mx) * _round_up(k, mx) * _round_up(nn, mx)
    cost_rows = bblk * _mm(thp, h, w) + _mm(bblk * thp, w, twp)
    cost_cols = _mm(bblk * h, w, twp) + bblk * _mm(thp, h, twp)
    rows_first = cost_rows < cost_cols

    need = weight_bytes + bblk * per_plane
    vmem_limit = int(min(int(cap * 0.92),
                         max(32 << 20, int(need * 1.3) + (4 << 20))))
    out_padded = (thp, twp) != (th, tw)

    def build(single_buffer_weights, batched):
        kernel = functools.partial(_resize_crop_kernel, bblk=bblk,
                                   rows_first=rows_first, batched=batched)
        wkw = {"pipeline_mode": pl.Buffered(1)} if single_buffer_weights else {}
        pc = pl.pallas_call(
            kernel,
            out_shape=jax.ShapeDtypeStruct((nc, thp, twp), jnp.float32),
            grid=(nb,),
            in_specs=[
                pl.BlockSpec((bblk, h, w), lambda g: (g, 0, 0)),
                pl.BlockSpec((thp, h), lambda g: (0, 0), **wkw),   # grid-invariant
                pl.BlockSpec((w, twp), lambda g: (0, 0), **wkw),   # grid-invariant
            ],
            out_specs=pl.BlockSpec((bblk, thp, twp), lambda g: (g, 0, 0)),
            compiler_params=pltpu.CompilerParams(
                dimension_semantics=("parallel",),
                vmem_limit_bytes=vmem_limit,
            ),
        )

        def fn(x_nchw, rh_c, rwt_c):
            # NCHW -> (N*C, H, W) merges leading dims only: metadata-only reshape,
            # no host pad, no host cast (the kernel converts in VMEM).
            x_flat = x_nchw.reshape(nc, h, w)
            out = pc(x_flat, rh_c, rwt_c)            # (nc, thp, twp) f32, lane-dense
            if out_padded:
                out = out[:, :th, :tw]
            return out.reshape(n, c, th, tw)

        return jax.jit(fn)

    probe_args = (jax.ShapeDtypeStruct((n, c, h, w), jnp.dtype(in_dtype_name)),
                  jax.ShapeDtypeStruct((thp, h), jnp.dtype(w_dtype_name)),
                  jax.ShapeDtypeStruct((w, twp), jnp.dtype(w_dtype_name)))
    # Probe-and-fallback chain: (single-buffered weights, batched matmuls) ->
    # (double-buffered, batched) -> (double-buffered, per-plane loop).
    fn = None
    for single_buf, batched in ((True, True), (False, True), (False, False)):
        try:
            cand = build(single_buf, batched)
            cand.lower(*probe_args)       # catches spec / Mosaic lowering issues
            fn = cand
            break
        except Exception:
            fn = None
    if fn is None:
        fn = build(False, False)
    return fn


# ----------------------------------------------------------------------------
# Module-equivalent wrapper
# ----------------------------------------------------------------------------
class MultiAspectRatioResizeCenterCropWithInfo:
    """JAX/Pallas port.  Images are NCHW arrays (f32/bf16/uint8...)."""

    def __init__(self, *args, sizes, compute_dtype=jnp.float32, **kwargs):
        if isinstance(sizes, dict):
            self.sizes = list(sizes.values())
        else:
            self.sizes = list(sizes)
        self.aspect_ratios = np.array([s[0] / s[1] for s in self.sizes])
        self.compute_dtype = jnp.dtype(compute_dtype)   # bf16 is an opt-in speedup

    def forward(self, image):
        is_list = isinstance(image, list)
        image_list = image if is_list else [image]

        for i, img in enumerate(image_list):
            n, c, h, w = img.shape
            aspect_ratio = h / w
            bucket_id = int(np.argmin(np.abs(aspect_ratio - self.aspect_ratios)))
            target_size = self.sizes[bucket_id]
            th, tw = int(target_size[0]), int(target_size[1])
            scale = max(th / h, tw / w)
            # Faithful to the original: resize size is (int(w*scale), int(h*scale)),
            # interpreted by torchvision as (height, width).
            resized_h = int(w * scale)
            resized_w = int(h * scale)
            # torchvision center_crop (PIL path) uses round(); size_info uses //2.
            top = int(round((resized_h - th) / 2.0))
            left = int(round((resized_w - tw) / 2.0))
            if top < 0 or left < 0 or top + th > resized_h or left + tw > resized_w:
                # TODO(synk): torchvision center_crop zero-pads when resized < target;
                # the padding branch is not implemented for crop-folded matrices.
                raise NotImplementedError("center_crop padding branch not implemented")

            thp = _round_up(th, 8)
            twp = _round_up(tw, 128)
            rh_c, rwt_c = _crop_folded_mats(h, w, resized_h, resized_w, top, left,
                                            th, tw, thp, twp, self.compute_dtype.name)
            fn = _make_resize_crop_fn(n, c, h, w, th, tw,
                                      jnp.dtype(img.dtype).name,
                                      self.compute_dtype.name)
            image_list[i] = fn(img, rh_c, rwt_c)
            last_resized = (resized_h, resized_w)
            last_target = (th, tw)
            last_aspect = aspect_ratio

        # Matches the original: info reflects the last image processed.
        size_info = {}
        size_info["before_crop_size"] = [last_resized[0], last_resized[1]]
        size_info["crop_top_left"] = [(last_resized[0] - last_target[0]) // 2,
                                      (last_resized[1] - last_target[1]) // 2]
        size_info["crop_bottom_right"] = [size_info["crop_top_left"][0] + last_target[0],
                                          size_info["crop_top_left"][1] + last_target[1]]
        bucket_id_str = str(int(np.argmin(np.abs(last_aspect - self.aspect_ratios))))

        image_out = image_list if is_list else image_list[0]
        return image_out, bucket_id_str, size_info

    __call__ = forward


if __name__ == "__main__":
    key = jax.random.PRNGKey(0)
    # Small NCHW batch: 2 images, 3 channels, 20x24 spatial.
    x = jax.random.uniform(key, (2, 3, 20, 24), dtype=jnp.float32)

    sizes = [[16, 16], [16, 24], [24, 16]]
    transform = MultiAspectRatioResizeCenterCropWithInfo(sizes=sizes)

    out_img, bucket_id, size_info = transform(x)
    out_img = jax.block_until_ready(out_img)

    # Host-side float64 reference: full (uncropped) resize matrices, same crop.
    h, w = 20, 24
    aspect_ratio = h / w
    bid = int(np.argmin(np.abs(aspect_ratio - transform.aspect_ratios)))
    th, tw = sizes[bid]
    scale = max(th / h, tw / w)
    resized_h, resized_w = int(w * scale), int(h * scale)
    top = int(round((resized_h - th) / 2.0))
    left = int(round((resized_w - tw) / 2.0))
    rh_full = _pil_bilinear_weights(h, resized_h).astype(np.float64)
    rw_full = _pil_bilinear_weights(w, resized_w).astype(np.float64)
    x_np = np.asarray(x, dtype=np.float64)
    ref = np.einsum("oh,nchw->ncow", rh_full, x_np)
    ref = np.einsum("pw,ncow->ncop", rw_full, ref)
    ref = ref[:, :, top:top + th, left:left + tw]

    assert out_img.shape == (2, 3, th, tw), out_img.shape
    np.testing.assert_allclose(np.asarray(out_img, dtype=np.float64), ref,
                               rtol=0, atol=5e-3)
    assert bucket_id == str(bid)
    assert size_info["before_crop_size"] == [resized_h, resized_w]
    assert size_info["crop_top_left"] == [(resized_h - th) // 2, (resized_w - tw) // 2]
    assert size_info["crop_bottom_right"] == [(resized_h - th) // 2 + th,
                                              (resized_w - tw) // 2 + tw]

    # Second call hits every cache (weights, device transfer, jitted pallas_call).
    out_img2, _, _ = transform(x)
    jax.block_until_ready(out_img2)
    np.testing.assert_allclose(np.asarray(out_img2), np.asarray(out_img),
                               rtol=0, atol=0)

    print("KERNEL_OK")
</pallas_src>

<mosaic_0001>
module attributes {stable_mosaic.version = 11 : i64} {
  func.func @_resize_crop_kernel(%arg0: i32, %arg1: memref<6x20x24xf32, #tpu.memory_space<vmem>>, %arg2: memref<16x20xf32, #tpu.memory_space<vmem>>, %arg3: memref<24x128xf32, #tpu.memory_space<vmem>>, %arg4: memref<6x16x128xf32, #tpu.memory_space<vmem>>) attributes {dimension_semantics = [#tpu.dimension_semantics<parallel>], iteration_bounds = array<i64: 1>, scalar_prefetch = 0 : i64, scratch_operands = 0 : i64, tpu.core_type = #tpu.core_type<tc>, window_params = [{transform_indices = @transform_0, window_bounds = array<i64: 6, 20, 24>}, {pipeline_mode = #tpu.pipeline_mode<synchronous>, transform_indices = @transform_1, window_bounds = array<i64: 16, 20>}, {pipeline_mode = #tpu.pipeline_mode<synchronous>, transform_indices = @transform_2, window_bounds = array<i64: 24, 128>}, {transform_indices = @transform_3, window_bounds = array<i64: 6, 16, 128>}]} {
    %c0 = arith.constant 0 : index
    %c0_0 = arith.constant 0 : index
    %0 = vector.load %arg2[%c0, %c0_0] : memref<16x20xf32, #tpu.memory_space<vmem>>, vector<16x20xf32>
    %c0_1 = arith.constant 0 : index
    %c0_2 = arith.constant 0 : index
    %1 = vector.load %arg3[%c0_1, %c0_2] : memref<24x128xf32, #tpu.memory_space<vmem>>, vector<24x128xf32>
    %c0_3 = arith.constant 0 : index
    %c0_4 = arith.constant 0 : index
    %c0_5 = arith.constant 0 : index
    %2 = vector.load %arg1[%c0_3, %c0_4, %c0_5] : memref<6x20x24xf32, #tpu.memory_space<vmem>>, vector<1x20x24xf32>
    %3 = vector.shape_cast %2 : vector<1x20x24xf32> to vector<20x24xf32>
    %cst = arith.constant dense<0.000000e+00> : vector<20x128xf32>
    %4 = tpu.matmul %3, %1, %cst {dimension_numbers = #tpu.dot_dimension_numbers<[1], [0], [0], [1], [0, 0, 1, 1], [], []>} : vector<20x24xf32>, vector<24x128xf32>, vector<20x128xf32> -> vector<20x128xf32>
    %cst_6 = arith.constant dense<0.000000e+00> : vector<16x128xf32>
    %5 = tpu.matmul %0, %4, %cst_6 {dimension_numbers = #tpu.dot_dimension_numbers<[1], [0], [0], [1], [0, 0, 1, 1], [], []>} : vector<16x20xf32>, vector<20x128xf32>, vector<16x128xf32> -> vector<16x128xf32>
    %c0_7 = arith.constant 0 : index
    %c0_8 = arith.constant 0 : index
    %c0_9 = arith.constant 0 : index
    %6 = vector.load %arg4[%c0_7, %c0_8, %c0_9] : memref<6x16x128xf32, #tpu.memory_space<vmem>>, vector<1x16x128xf32>
    %7 = vector.shape_cast %6 : vector<1x16x128xf32> to vector<16x128xf32>
    %8 = vector.shape_cast %5 : vector<16x128xf32> to vector<1x16x128xf32>
    tpu.vector_store %arg4[%c0_7, %c0_8, %c0_9], %8 {strides = array<i32>} : memref<6x16x128xf32, #tpu.memory_space<vmem>>, vector<1x16x128xf32>,
    %c1 = arith.constant 1 : index
    %c0_10 = arith.constant 0 : index
    %c0_11 = arith.constant 0 : index
    %9 = vector.load %arg1[%c1, %c0_10, %c0_11] : memref<6x20x24xf32, #tpu.memory_space<vmem>>, vector<1x20x24xf32>
    %10 = vector.shape_cast %9 : vector<1x20x24xf32> to vector<20x24xf32>
    %cst_12 = arith.constant dense<0.000000e+00> : vector<20x128xf32>
    %11 = tpu.matmul %10, %1, %cst_12 {dimension_numbers = #tpu.dot_dimension_numbers<[1], [0], [0], [1], [0, 0, 1, 1], [], []>} : vector<20x24xf32>, vector<24x128xf32>, vector<20x128xf32> -> vector<20x128xf32>
    %cst_13 = arith.constant dense<0.000000e+00> : vector<16x128xf32>
    %12 = tpu.matmul %0, %11, %cst_13 {dimension_numbers = #tpu.dot_dimension_numbers<[1], [0], [0], [1], [0, 0, 1, 1], [], []>} : vector<16x20xf32>, vector<20x128xf32>, vector<16x128xf32> -> vector<16x128xf32>
    %c1_14 = arith.constant 1 : index
    %c0_15 = arith.constant 0 : index
    %c0_16 = arith.constant 0 : index
    %13 = vector.load %arg4[%c1_14, %c0_15, %c0_16] : memref<6x16x128xf32, #tpu.memory_space<vmem>>, vector<1x16x128xf32>
    %14 = vector.shape_cast %13 : vector<1x16x128xf32> to vector<16x128xf32>
    %15 = vector.shape_cast %12 : vector<16x128xf32> to vector<1x16x128xf32>
    tpu.vector_store %arg4[%c1_14, %c0_15, %c0_16], %15 {strides = array<i32>} : memref<6x16x128xf32, #tpu.memory_space<vmem>>, vector<1x16x128xf32>,
    %c2 = arith.constant 2 : index
    %c0_17 = arith.constant 0 : index
    %c0_18 = arith.constant 0 : index
    %16 = vector.load %arg1[%c2, %c0_17, %c0_18] : memref<6x20x24xf32, #tpu.memory_space<vmem>>, vector<1x20x24xf32>
    %17 = vector.shape_cast %16 : vector<1x20x24xf32> to vector<20x24xf32>
    %cst_19 = arith.constant dense<0.000000e+00> : vector<20x128xf32>
    %18 = tpu.matmul %17, %1, %cst_19 {dimension_numbers = #tpu.dot_dimension_numbers<[1], [0], [0], [1], [0, 0, 1, 1], [], []>} : vector<20x24xf32>, vector<24x128xf32>, vector<20x128xf32> -> vector<20x128xf32>
    %cst_20 = arith.constant dense<0.000000e+00> : vector<16x128xf32>
    %19 = tpu.matmul %0, %18, %cst_20 {dimension_numbers = #tpu.dot_dimension_numbers<[1], [0], [0], [1], [0, 0, 1, 1], [], []>} : vector<16x20xf32>, vector<20x128xf32>, vector<16x128xf32> -> vector<16x128xf32>
    %c2_21 = arith.constant 2 : index
    %c0_22 = arith.constant 0 : index
    %c0_23 = arith.constant 0 : index
    %20 = vector.load %arg4[%c2_21, %c0_22, %c0_23] : memref<6x16x128xf32, #tpu.memory_space<vmem>>, vector<1x16x128xf32>
    %21 = vector.shape_cast %20 : vector<1x16x128xf32> to vector<16x128xf32>
    %22 = vector.shape_cast %19 : vector<16x128xf32> to vector<1x16x128xf32>
    tpu.vector_store %arg4[%c2_21, %c0_22, %c0_23], %22 {strides = array<i32>} : memref<6x16x128xf32, #tpu.memory_space<vmem>>, vector<1x16x128xf32>,
    %c3 = arith.constant 3 : index
    %c0_24 = arith.constant 0 : index
    %c0_25 = arith.constant 0 : index
    %23 = vector.load %arg1[%c3, %c0_24, %c0_25] : memref<6x20x24xf32, #tpu.memory_space<vmem>>, vector<1x20x24xf32>
    %24 = vector.shape_cast %23 : vector<1x20x24xf32> to vector<20x24xf32>
    %cst_26 = arith.constant dense<0.000000e+00> : vector<20x128xf32>
    %25 = tpu.matmul %24, %1, %cst_26 {dimension_numbers = #tpu.dot_dimension_numbers<[1], [0], [0], [1], [0, 0, 1, 1], [], []>} : vector<20x24xf32>, vector<24x128xf32>, vector<20x128xf32> -> vector<20x128xf32>
    %cst_27 = arith.constant dense<0.000000e+00> : vector<16x128xf32>
    %26 = tpu.matmul %0, %25, %cst_27 {dimension_numbers = #tpu.dot_dimension_numbers<[1], [0], [0], [1], [0, 0, 1, 1], [], []>} : vector<16x20xf32>, vector<20x128xf32>, vector<16x128xf32> -> vector<16x128xf32>
    %c3_28 = arith.constant 3 : index
    %c0_29 = arith.constant 0 : index
    %c0_30 = arith.constant 0 : index
    %27 = vector.load %arg4[%c3_28, %c0_29, %c0_30] : memref<6x16x128xf32, #tpu.memory_space<vmem>>, vector<1x16x128xf32>
    %28 = vector.shape_cast %27 : vector<1x16x128xf32> to vector<16x128xf32>
    %29 = vector.shape_cast %26 : vector<16x128xf32> to vector<1x16x128xf32>
    tpu.vector_store %arg4[%c3_28, %c0_29, %c0_30], %29 {strides = array<i32>} : memref<6x16x128xf32, #tpu.memory_space<vmem>>, vector<1x16x128xf32>,
    %c4 = arith.constant 4 : index
    %c0_31 = arith.constant 0 : index
    %c0_32 = arith.constant 0 : index
    %30 = vector.load %arg1[%c4, %c0_31, %c0_32] : memref<6x20x24xf32, #tpu.memory_space<vmem>>, vector<1x20x24xf32>
    %31 = vector.shape_cast %30 : vector<1x20x24xf32> to vector<20x24xf32>
    %cst_33 = arith.constant dense<0.000000e+00> : vector<20x128xf32>
    %32 = tpu.matmul %31, %1, %cst_33 {dimension_numbers = #tpu.dot_dimension_numbers<[1], [0], [0], [1], [0, 0, 1, 1], [], []>} : vector<20x24xf32>, vector<24x128xf32>, vector<20x128xf32> -> vector<20x128xf32>
    %cst_34 = arith.constant dense<0.000000e+00> : vector<16x128xf32>
    %33 = tpu.matmul %0, %32, %cst_34 {dimension_numbers = #tpu.dot_dimension_numbers<[1], [0], [0], [1], [0, 0, 1, 1], [], []>} : vector<16x20xf32>, vector<20x128xf32>, vector<16x128xf32> -> vector<16x128xf32>
    %c4_35 = arith.constant 4 : index
    %c0_36 = arith.constant 0 : index
    %c0_37 = arith.constant 0 : index
    %34 = vector.load %arg4[%c4_35, %c0_36, %c0_37] : memref<6x16x128xf32, #tpu.memory_space<vmem>>, vector<1x16x128xf32>
    %35 = vector.shape_cast %34 : vector<1x16x128xf32> to vector<16x128xf32>
    %36 = vector.shape_cast %33 : vector<16x128xf32> to vector<1x16x128xf32>
    tpu.vector_store %arg4[%c4_35, %c0_36, %c0_37], %36 {strides = array<i32>} : memref<6x16x128xf32, #tpu.memory_space<vmem>>, vector<1x16x128xf32>,
    %c5 = arith.constant 5 : index
    %c0_38 = arith.constant 0 : index
    %c0_39 = arith.constant 0 : index
    %37 = vector.load %arg1[%c5, %c0_38, %c0_39] : memref<6x20x24xf32, #tpu.memory_space<vmem>>, vector<1x20x24xf32>
    %38 = vector.shape_cast %37 : vector<1x20x24xf32> to vector<20x24xf32>
    %cst_40 = arith.constant dense<0.000000e+00> : vector<20x128xf32>
    %39 = tpu.matmul %38, %1, %cst_40 {dimension_numbers = #tpu.dot_dimension_numbers<[1], [0], [0], [1], [0, 0, 1, 1], [], []>} : vector<20x24xf32>, vector<24x128xf32>, vector<20x128xf32> -> vector<20x128xf32>
    %cst_41 = arith.constant dense<0.000000e+00> : vector<16x128xf32>
    %40 = tpu.matmul %0, %39, %cst_41 {dimension_numbers = #tpu.dot_dimension_numbers<[1], [0], [0], [1], [0, 0, 1, 1], [], []>} : vector<16x20xf32>, vector<20x128xf32>, vector<16x128xf32> -> vector<16x128xf32>
    %c5_42 = arith.constant 5 : index
    %c0_43 = arith.constant 0 : index
    %c0_44 = arith.constant 0 : index
    %41 = vector.load %arg4[%c5_42, %c0_43, %c0_44] : memref<6x16x128xf32, #tpu.memory_space<vmem>>, vector<1x16x128xf32>
    %42 = vector.shape_cast %41 : vector<1x16x128xf32> to vector<16x128xf32>
    %43 = vector.shape_cast %40 : vector<16x128xf32> to vector<1x16x128xf32>
    tpu.vector_store %arg4[%c5_42, %c0_43, %c0_44], %43 {strides = array<i32>} : memref<6x16x128xf32, #tpu.memory_space<vmem>>, vector<1x16x128xf32>,
    return
  }
  func.func @transform_0(%arg0: i32) -> (i32, i32, i32) {
    %c0_i32 = arith.constant 0 : i32
    %c0_i32_0 = arith.constant 0 : i32
    %c0_i32_1 = arith.constant 0 : i32
    return %arg0, %c0_i32, %c0_i32_0 : i32, i32, i32
  }
  func.func @transform_1(%arg0: i32) -> (i32, i32) {
    %c0_i32 = arith.constant 0 : i32
    %c0_i32_0 = arith.constant 0 : i32
    %c0_i32_1 = arith.constant 0 : i32
    return %c0_i32, %c0_i32_0 : i32, i32
  }
  func.func @transform_2(%arg0: i32) -> (i32, i32) {
    %c0_i32 = arith.constant 0 : i32
    %c0_i32_0 = arith.constant 0 : i32
    %c0_i32_1 = arith.constant 0 : i32
    return %c0_i32, %c0_i32_0 : i32, i32
  }
  func.func @transform_3(%arg0: i32) -> (i32, i32, i32) {
    %c0_i32 = arith.constant 0 : i32
    %c0_i32_0 = arith.constant 0 : i32
    %c0_i32_1 = arith.constant 0 : i32
    return %arg0, %c0_i32, %c0_i32_0 : i32, i32, i32
  }
}

</mosaic_0001>

<llo_original>
// kernel: fn.1
$region0: #{fn.1}
  #allocation0 [shape = 'u32[]', space=smem, size = 0x4, offset = 0x4, fixed_abs, tag = 'smem constant byte address 0x4 - core index']
  #allocation1 [shape = 'u32[144,128]{1,0:T(1,128)}', space=vmem, size = 0x12000, scoped, tag = 'internal scratch']
  %s0 = inlined_call_operand.vmem [shape: f32[6,20,24], index: 0, kind: input, shape index: {}]
  %s1 = inlined_call_operand.vmem [shape: f32[16,20], index: 1, kind: input, shape index: {}]
  %s2 = inlined_call_operand.vmem [shape: f32[24,128], index: 2, kind: input, shape index: {}]
  %s3 = inlined_call_operand.hbm [shape: f32[6,16,128], index: 3, kind: output, shape index: {}]
  %s4 = sld [smem:[#allocation0]]
  $region22: #{fn.1} parent=0
    _
  %s6 = ssub.s32 1, %s4
  %s7 = scalar_select 0, %s6, %s4
  $region1: #{fn.1} parent=0
    #allocation2 [shape = 'u8[49152]{0}', space=vmem, size = 0xc000, scoped, tag = 'output window, operand 0, single buffered']
    #allocation3 [shape = 's32[1]{0}', space=sflag, size = 0x4, scoped, tag = 'scoped memory for fn.1']
    %8 = vsyncpa [#allocation3], 0
    // Predicated region
    $region2: #{fn.1} parent=1 // pred_check
      _
    $region3: #{fn.1} parent=1 // pred_check_branch
      %10 = sbr.rel (0) target = $region5
    $region4: #{fn.1} parent=1 // pred_region
      _
    $region5: #{fn.1} parent=1 // pred_fallthru
      _
    // Predicated region
    $region6: #{fn.1} parent=1 // pred_check
      _
    $region7: #{fn.1} parent=1 // pred_check_branch
      %12 = sbr.rel (0) target = $region9
    $region8: #{fn.1} parent=1 // pred_region
      _
    $region9: #{fn.1} parent=1 // pred_fallthru
      _
    // Predicated region
    $region10: #{fn.1} parent=1 // pred_check
      _
    $region11: #{fn.1} parent=1 // pred_check_branch
      %14 = sbr.rel (0) target = $region13
    $region12: #{fn.1} parent=1 // pred_region
      _
    $region13: #{fn.1} parent=1 // pred_fallthru
      _
    %v15 = vld [vmem:[%s1] sm:$0xff]
    %v16 = vld [vmem:[%s1 + $0x8] sm:$0xff]
    %v17 = vld [vmem:[%s2] sm:$0xff]
    %v18 = vld [vmem:[%s2 + $0x8] sm:$0xff]
    %v19 = vld [vmem:[%s2 + $0x10] sm:$0xff]
    %v20 = vld [vmem:[%s0] sm:$0xff]
    %v21 = vld [vmem:[%s0 + $0x8] sm:$0xff]
    %v22 = vld [vmem:[%s0 + $0x10] sm:$0xf]
    %vm23 = vcmask 195584
    %v25 = vsel %vm23, %v20, 0
    %v28 = vsel %vm23, %v21, 0
    %v31 = vsel %vm23, %v22, 0
    %33 = vmatprep.subr.mxu0 0.0
    %34 = vmatpush1.msra.mxu0 0.0
    %35 = vmatprep.subr.mxu0 0.0
    %36 = vmatpush1.msra.mxu0 0.0
    %37 = vmatprep.subr.mxu0 0.0
    %38 = vmatpush1.msra.mxu0 0.0
    %39 = vmatprep.subr.mxu0 0.0
    %40 = vmatpush1.msra.mxu0 0.0
    %41 = vmatprep.subr.mxu0 0.0
    %42 = vmatpush1.msra.mxu0 0.0
    %43 = vmatprep.subr.mxu0 0.0
    %44 = vmatpush1.msra.mxu0 0.0
    %45 = vmatprep.subr.mxu0 0.0
    %46 = vmatpush1.msra.mxu0 0.0
    %47 = vmatprep.subr.mxu0 0.0
    %48 = vmatpush1.msra.mxu0 0.0
    %49 = vmatprep.subr.mxu0 0.0
    %50 = vmatpush1.msra.mxu0 0.0
    %51 = vmatprep.subr.mxu0 0.0
    %52 = vmatpush1.msra.mxu0 0.0
    %53 = vmatprep.subr.mxu0 0.0
    %54 = vmatpush1.msra.mxu0 0.0
    %55 = vmatprep.subr.mxu0 0.0
    %56 = vmatpush1.msra.mxu0 0.0
    %57 = vmatprep.subr.mxu0 0.0
    %58 = vmatpush1.msra.mxu0 0.0
    %59 = vmatprep.subr.mxu0 0.0
    %60 = vmatpush1.msra.mxu0 %v19
    %61 = vmatprep.subr.mxu0 0.0
    %62 = vmatpush1.msra.mxu0 %v18
    %63 = vmatprep.subr.mxu0 0.0
    %64 = vmatpush1.msra.mxu0 %v17
    %65 = vmatprep.subr.mxu0 0.0
    %66 = vmatpush2.msra.mxu0 0.0
    %67 = vmatprep.subr.mxu0 0.0
    %68 = vmatpush2.msra.mxu0 0.0
    %69 = vmatprep.subr.mxu0 0.0
    %70 = vmatpush2.msra.mxu0 0.0
    %71 = vmatprep.subr.mxu0 0.0
    %72 = vmatpush2.msra.mxu0 0.0
    %73 = vmatprep.subr.mxu0 0.0
    %74 = vmatpush2.msra.mxu0 0.0
    %75 = vmatprep.subr.mxu0 0.0
    %76 = vmatpush2.msra.mxu0 0.0
    %77 = vmatprep.subr.mxu0 0.0
    %78 = vmatpush2.msra.mxu0 0.0
    %79 = vmatprep.subr.mxu0 0.0
    %80 = vmatpush2.msra.mxu0 0.0
    %81 = vmatprep.subr.mxu0 0.0
    %82 = vmatpush2.msra.mxu0 0.0
    %83 = vmatprep.subr.mxu0 0.0
    %84 = vmatpush2.msra.mxu0 0.0
    %85 = vmatprep.subr.mxu0 0.0
    %86 = vmatpush2.msra.mxu0 0.0
    %87 = vmatprep.subr.mxu0 0.0
    %88 = vmatpush2.msra.mxu0 0.0
    %89 = vmatprep.subr.mxu0 0.0
    %90 = vmatpush2.msra.mxu0 0.0
    %91 = vmatprep.subr.mxu0 0.0
    %92 = vmatpush2.msra.mxu0 0.0
    %93 = vmatprep.subr.mxu0 0.0
    %94 = vmatpush2.msra.mxu0 0.0
    %95 = vmatprep.subr.mxu0 0.0
    %96 = vmatpush2.msra.mxu0 0.0
    %97 = vmatprep.mubr.f32.mxu0 0.0
    %98 = vmatmul.mubr.f32.gmra.mxu0 %v25
    %v99 = vpop.f32.mrf.mxu0
    %v100 = vadd.f32 0.0, %v99
    %v101 = vpop.f32.mrf.mxu0
    %102 = vmatprep.mubr.f32.mxu0 0.0
    %103 = vmatmul.mubr.f32.gmra.mxu0 %v28
    %v104 = vpop.f32.mrf.mxu0
    %v105 = vadd.f32 0.0, %v104
    %v106 = vpop.f32.mrf.mxu0
    %107 = vmatprep.mubr.f32.mxu0 0.0
    %108 = vmatmul.mubr.f32.gmra.mxu0 %v31
    %v109 = vpop.f32.mrf.mxu0
    %v110 = vadd.f32 0.0, %v109
    %v111 = vpop.f32.mrf.mxu0
    %112 = vdwg.mxu0
    %vm113 = vcmask 162816
    %v115 = vsel %vm113, %v15, 0
    %v118 = vsel %vm113, %v16, 0
    %vm120 = vcmask 1043456
    %v122 = vsel %vm120, %v110, 0
    %124 = vmatprep.subr.mxu0 0.0
    %125 = vmatpush1.msra.mxu0 0.0
    %126 = vmatprep.subr.mxu0 0.0
    %127 = vmatpush1.msra.mxu0 0.0
    %128 = vmatprep.subr.mxu0 0.0
    %129 = vmatpush1.msra.mxu0 0.0
    %130 = vmatprep.subr.mxu0 0.0
    %131 = vmatpush1.msra.mxu0 0.0
    %132 = vmatprep.subr.mxu0 0.0
    %133 = vmatpush1.msra.mxu0 0.0
    %134 = vmatprep.subr.mxu0 0.0
    %135 = vmatpush1.msra.mxu0 0.0
    %136 = vmatprep.subr.mxu0 0.0
    %137 = vmatpush1.msra.mxu0 0.0
    %138 = vmatprep.subr.mxu0 0.0
    %139 = vmatpush1.msra.mxu0 0.0
    %140 = vmatprep.subr.mxu0 0.0
    %141 = vmatpush1.msra.mxu0 0.0
    %142 = vmatprep.subr.mxu0 0.0
    %143 = vmatpush1.msra.mxu0 0.0
    %144 = vmatprep.subr.mxu0 0.0
    %145 = vmatpush1.msra.mxu0 0.0
    %146 = vmatprep.subr.mxu0 0.0
    %147 = vmatpush1.msra.mxu0 0.0
    %148 = vmatprep.subr.mxu0 0.0
    %149 = vmatpush1.msra.mxu0 0.0
    %150 = vmatprep.subr.mxu0 0.0
    %151 = vmatpush1.msra.mxu0 %v122
    %152 = vmatprep.subr.mxu0 0.0
    %153 = vmatpush1.msra.mxu0 %v105
    %154 = vmatprep.subr.mxu0 0.0
    %155 = vmatpush1.msra.mxu0 %v100
    %156 = vmatprep.subr.mxu0 0.0
    %157 = vmatpush2.msra.mxu0 0.0
    %158 = vmatprep.subr.mxu0 0.0
    %159 = vmatpush2.msra.mxu0 0.0
    %160 = vmatprep.subr.mxu0 0.0
    %161 = vmatpush2.msra.mxu0 0.0
    %162 = vmatprep.subr.mxu0 0.0
    %163 = vmatpush2.msra.mxu0 0.0
    %164 = vmatprep.subr.mxu0 0.0
    %165 = vmatpush2.msra.mxu0 0.0
    %166 = vmatprep.subr.mxu0 0.0
    %167 = vmatpush2.msra.mxu0 0.0
    %168 = vmatprep.subr.mxu0 0.0
    %169 = vmatpush2.msra.mxu0 0.0
    %170 = vmatprep.subr.mxu0 0.0
    %171 = vmatpush2.msra.mxu0 0.0
    %172 = vmatprep.subr.mxu0 0.0
    %173 = vmatpush2.msra.mxu0 0.0
    %174 = vmatprep.subr.mxu0 0.0
    %175 = vmatpush2.msra.mxu0 0.0
    %176 = vmatprep.subr.mxu0 0.0
    %177 = vmatpush2.msra.mxu0 0.0
    %178 = vmatprep.subr.mxu0 0.0
    %179 = vmatpush2.msra.mxu0 0.0
    %180 = vmatprep.subr.mxu0 0.0
    %181 = vmatpush2.msra.mxu0 0.0
    %182 = vmatprep.subr.mxu0 0.0
    %183 = vmatpush2.msra.mxu0 0.0
    %184 = vmatprep.subr.mxu0 0.0
    %185 = vmatpush2.msra.mxu0 0.0
    %186 = vmatprep.subr.mxu0 0.0
    %187 = vmatpush2.msra.mxu0 0.0
    %188 = vmatprep.mubr.f32.mxu0 0.0
    %189 = vmatmul.mubr.f32.gmra.mxu0 %v115
    %v190 = vpop.f32.mrf.mxu0
    %v191 = vadd.f32 0.0, %v190
    %v192 = vpop.f32.mrf.mxu0
    %193 = vmatprep.mubr.f32.mxu0 0.0
    %194 = vmatmul.mubr.f32.gmra.mxu0 %v118
    %v195 = vpop.f32.mrf.mxu0
    %v196 = vadd.f32 0.0, %v195
    %v197 = vpop.f32.mrf.mxu0
    %198 = vdwg.mxu0
    %199 = vst [vmem:[#allocation2] sm:$0xff] %v191
    %200 = vst [vmem:[#allocation2 + $0x8] sm:$0xff] %v196
    %s201 = scalar_lea.vmem %s0, 24
    %v202 = vld [vmem:[%s201] sm:$0xff]
    %v203 = vld [vmem:[%s201 + $0x8] sm:$0xff]
    %v204 = vld [vmem:[%s201 + $0x10] sm:$0xf]
    %v206 = vsel %vm23, %v202, 0
    %v209 = vsel %vm23, %v203, 0
    %v212 = vsel %vm23, %v204, 0
    %214 = vmatprep.subr.mxu0 0.0
    %215 = vmatpush1.msra.mxu0 0.0
    %216 = vmatprep.subr.mxu0 0.0
    %217 = vmatpush1.msra.mxu0 0.0
    %218 = vmatprep.subr.mxu0 0.0
    %219 = vmatpush1.msra.mxu0 0.0
    %220 = vmatprep.subr.mxu0 0.0
    %221 = vmatpush1.msra.mxu0 0.0
    %222 = vmatprep.subr.mxu0 0.0
    %223 = vmatpush1.msra.mxu0 0.0
    %224 = vmatprep.subr.mxu0 0.0
    %225 = vmatpush1.msra.mxu0 0.0
    %226 = vmatprep.subr.mxu0 0.0
    %227 = vmatpush1.msra.mxu0 0.0
    %228 = vmatprep.subr.mxu0 0.0
    %229 = vmatpush1.msra.mxu0 0.0
    %230 = vmatprep.subr.mxu0 0.0
    %231 = vmatpush1.msra.mxu0 0.0
    %232 = vmatprep.subr.mxu0 0.0
    %233 = vmatpush1.msra.mxu0 0.0
    %234 = vmatprep.subr.mxu0 0.0
    %235 = vmatpush1.msra.mxu0 0.0
    %236 = vmatprep.subr.mxu0 0.0
    %237 = vmatpush1.msra.mxu0 0.0
    %238 = vmatprep.subr.mxu0 0.0
    %239 = vmatpush1.msra.mxu0 0.0
    %240 = vmatprep.subr.mxu0 0.0
    %241 = vmatpush1.msra.mxu0 %v19
    %242 = vmatprep.subr.mxu0 0.0
    %243 = vmatpush1.msra.mxu0 %v18
    %244 = vmatprep.subr.mxu0 0.0
    %245 = vmatpush1.msra.mxu0 %v17
    %246 = vmatprep.subr.mxu0 0.0
    %247 = vmatpush2.msra.mxu0 0.0
    %248 = vmatprep.subr.mxu0 0.0
    %249 = vmatpush2.msra.mxu0 0.0
    %250 = vmatprep.subr.mxu0 0.0
    %251 = vmatpush2.msra.mxu0 0.0
    %252 = vmatprep.subr.mxu0 0.0
    %253 = vmatpush2.msra.mxu0 0.0
    %254 = vmatprep.subr.mxu0 0.0
    %255 = vmatpush2.msra.mxu0 0.0
    %256 = vmatprep.subr.mxu0 0.0
    %257 = vmatpush2.msra.mxu0 0.0
    %258 = vmatprep.subr.mxu0 0.0
    %259 = vmatpush2.msra.mxu0 0.0
    %260 = vmatprep.subr.mxu0 0.0
    %261 = vmatpush2.msra.mxu0 0.0
    %262 = vmatprep.subr.mxu0 0.0
    %263 = vmatpush2.msra.mxu0 0.0
    %264 = vmatprep.subr.mxu0 0.0
    %265 = vmatpush2.msra.mxu0 0.0
    %266 = vmatprep.subr.mxu0 0.0
    %267 = vmatpush2.msra.mxu0 0.0
    %268 = vmatprep.subr.mxu0 0.0
    %269 = vmatpush2.msra.mxu0 0.0
    %270 = vmatprep.subr.mxu0 0.0
    %271 = vmatpush2.msra.mxu0 0.0
    %272 = vmatprep.subr.mxu0 0.0
    %273 = vmatpush2.msra.mxu0 0.0
    %274 = vmatprep.subr.mxu0 0.0
    %275 = vmatpush2.msra.mxu0 0.0
    %276 = vmatprep.subr.mxu0 0.0
    %277 = vmatpush2.msra.mxu0 0.0
    %278 = vmatprep.mubr.f32.mxu0 0.0
    %279 = vmatmul.mubr.f32.gmra.mxu0 %v206
    %v280 = vpop.f32.mrf.mxu0
    %v281 = vadd.f32 0.0, %v280
    %v282 = vpop.f32.mrf.mxu0
    %283 = vmatprep.mubr.f32.mxu0 0.0
    %284 = vmatmul.mubr.f32.gmra.mxu0 %v209
    %v285 = vpop.f32.mrf.mxu0
    %v286 = vadd.f32 0.0, %v285
    %v287 = vpop.f32.mrf.mxu0
    %288 = vmatprep.mubr.f32.mxu0 0.0
    %289 = vmatmul.mubr.f32.gmra.mxu0 %v212
    %v290 = vpop.f32.mrf.mxu0
    %v291 = vadd.f32 0.0, %v290
    %v292 = vpop.f32.mrf.mxu0
    %293 = vdwg.mxu0
    %v295 = vsel %vm120, %v291, 0
    %297 = vmatprep.subr.mxu0 0.0
    %298 = vmatpush1.msra.mxu0 0.0
    %299 = vmatprep.subr.mxu0 0.0
    %300 = vmatpush1.msra.mxu0 0.0
    %301 = vmatprep.subr.mxu0 0.0
    %302 = vmatpush1.msra.mxu0 0.0
    %303 = vmatprep.subr.mxu0 0.0
    %304 = vmatpush1.msra.mxu0 0.0
    %305 = vmatprep.subr.mxu0 0.0
    %306 = vmatpush1.msra.mxu0 0.0
    %307 = vmatprep.subr.mxu0 0.0
    %308 = vmatpush1.msra.mxu0 0.0
    %309 = vmatprep.subr.mxu0 0.0
    %310 = vmatpush1.msra.mxu0 0.0
    %311 = vmatprep.subr.mxu0 0.0
    %312 = vmatpush1.msra.mxu0 0.0
    %313 = vmatprep.subr.mxu0 0.0
    %314 = vmatpush1.msra.mxu0 0.0
    %315 = vmatprep.subr.mxu0 0.0
    %316 = vmatpush1.msra.mxu0 0.0
    %317 = vmatprep.subr.mxu0 0.0
    %318 = vmatpush1.msra.mxu0 0.0
    %319 = vmatprep.subr.mxu0 0.0
    %320 = vmatpush1.msra.mxu0 0.0
    %321 = vmatprep.subr.mxu0 0.0
    %322 = vmatpush1.msra.mxu0 0.0
    %323 = vmatprep.subr.mxu0 0.0
    %324 = vmatpush1.msra.mxu0 %v295
    %325 = vmatprep.subr.mxu0 0.0
    %326 = vmatpush1.msra.mxu0 %v286
    %327 = vmatprep.subr.mxu0 0.0
    %328 = vmatpush1.msra.mxu0 %v281
    %329 = vmatprep.subr.mxu0 0.0
    %330 = vmatpush2.msra.mxu0 0.0
    %331 = vmatprep.subr.mxu0 0.0
    %332 = vmatpush2.msra.mxu0 0.0
    %333 = vmatprep.subr.mxu0 0.0
    %334 = vmatpush2.msra.mxu0 0.0
    %335 = vmatprep.subr.mxu0 0.0
    %336 = vmatpush2.msra.mxu0 0.0
    %337 = vmatprep.subr.mxu0 0.0
    %338 = vmatpush2.msra.mxu0 0.0
    %339 = vmatprep.subr.mxu0 0.0
    %340 = vmatpush2.msra.mxu0 0.0
    %341 = vmatprep.subr.mxu0 0.0
    %342 = vmatpush2.msra.mxu0 0.0
    %343 = vmatprep.subr.mxu0 0.0
    %344 = vmatpush2.msra.mxu0 0.0
    %345 = vmatprep.subr.mxu0 0.0
    %346 = vmatpush2.msra.mxu0 0.0
    %347 = vmatprep.subr.mxu0 0.0
    %348 = vmatpush2.msra.mxu0 0.0
    %349 = vmatprep.subr.mxu0 0.0
    %350 = vmatpush2.msra.mxu0 0.0
    %351 = vmatprep.subr.mxu0 0.0
    %352 = vmatpush2.msra.mxu0 0.0
    %353 = vmatprep.subr.mxu0 0.0
    %354 = vmatpush2.msra.mxu0 0.0
    %355 = vmatprep.subr.mxu0 0.0
    %356 = vmatpush2.msra.mxu0 0.0
    %357 = vmatprep.subr.mxu0 0.0
    %358 = vmatpush2.msra.mxu0 0.0
    %359 = vmatprep.subr.mxu0 0.0
    %360 = vmatpush2.msra.mxu0 0.0
    %361 = vmatprep.mubr.f32.mxu0 0.0
    %362 = vmatmul.mubr.f32.gmra.mxu0 %v115
    %v363 = vpop.f32.mrf.mxu0
    %v364 = vadd.f32 0.0, %v363
    %v365 = vpop.f32.mrf.mxu0
    %366 = vmatprep.mubr.f32.mxu0 0.0
    %367 = vmatmul.mubr.f32.gmra.mxu0 %v118
    %v368 = vpop.f32.mrf.mxu0
    %v369 = vadd.f32 0.0, %v368
    %v370 = vpop.f32.mrf.mxu0
    %371 = vdwg.mxu0
    %s372 = scalar_lea.vmem [#allocation2], 16
    %373 = vst [vmem:[%s372] sm:$0xff] %v364
    %374 = vst [vmem:[%s372 + $0x8] sm:$0xff] %v369
    %s375 = scalar_lea.vmem %s0, 48
    %v376 = vld [vmem:[%s375] sm:$0xff]
    %v377 = vld [vmem:[%s375 + $0x8] sm:$0xff]
    %v378 = vld [vmem:[%s375 + $0x10] sm:$0xf]
    %v380 = vsel %vm23, %v376, 0
    %v383 = vsel %vm23, %v377, 0
    %v386 = vsel %vm23, %v378, 0
    %388 = vmatprep.subr.mxu0 0.0
    %389 = vmatpush1.msra.mxu0 0.0
    %390 = vmatprep.subr.mxu0 0.0
    %391 = vmatpush1.msra.mxu0 0.0
    %392 = vmatprep.subr.mxu0 0.0
    %393 = vmatpush1.msra.mxu0 0.0
    %394 = vmatprep.subr.mxu0 0.0
    %395 = vmatpush1.msra.mxu0 0.0
    %396 = vmatprep.subr.mxu0 0.0
    %397 = vmatpush1.msra.mxu0 0.0
    %398 = vmatprep.subr.mxu0 0.0
    %399 = vmatpush1.msra.mxu0 0.0
    %400 = vmatprep.subr.mxu0 0.0
    %401 = vmatpush1.msra.mxu0 0.0
    %402 = vmatprep.subr.mxu0 0.0
    %403 = vmatpush1.msra.mxu0 0.0
    %404 = vmatprep.subr.mxu0 0.0
    %405 = vmatpush1.msra.mxu0 0.0
    %406 = vmatprep.subr.mxu0 0.0
    %407 = vmatpush1.msra.mxu0 0.0
    %408 = vmatprep.subr.mxu0 0.0
    %409 = vmatpush1.msra.mxu0 0.0
    %410 = vmatprep.subr.mxu0 0.0
    %411 = vmatpush1.msra.mxu0 0.0
    %412 = vmatprep.subr.mxu0 0.0
    %413 = vmatpush1.msra.mxu0 0.0
    %414 = vmatprep.subr.mxu0 0.0
    %415 = vmatpush1.msra.mxu0 %v19
    %416 = vmatprep.subr.mxu0 0.0
    %417 = vmatpush1.msra.mxu0 %v18
    %418 = vmatprep.subr.mxu0 0.0
    %419 = vmatpush1.msra.mxu0 %v17
    %420 = vmatprep.subr.mxu0 0.0
    %421 = vmatpush2.msra.mxu0 0.0
    %422 = vmatprep.subr.mxu0 0.0
    %423 = vmatpush2.msra.mxu0 0.0
    %424 = vmatprep.subr.mxu0 0.0
    %425 = vmatpush2.msra.mxu0 0.0
    %426 = vmatprep.subr.mxu0 0.0
    %427 = vmatpush2.msra.mxu0 0.0
    %428 = vmatprep.subr.mxu0 0.0
    %429 = vmatpush2.msra.mxu0 0.0
    %430 = vmatprep.subr.mxu0 0.0
    %431 = vmatpush2.msra.mxu0 0.0
    %432 = vmatprep.subr.mxu0 0.0
    %433 = vmatpush2.msra.mxu0 0.0
    %434 = vmatprep.subr.mxu0 0.0
    %435 = vmatpush2.msra.mxu0 0.0
    %436 = vmatprep.subr.mxu0 0.0
    %437 = vmatpush2.msra.mxu0 0.0
    %438 = vmatprep.subr.mxu0 0.0
    %439 = vmatpush2.msra.mxu0 0.0
    %440 = vmatprep.subr.mxu0 0.0
    %441 = vmatpush2.msra.mxu0 0.0
    %442 = vmatprep.subr.mxu0 0.0
    %443 = vmatpush2.msra.mxu0 0.0
    %444 = vmatprep.subr.mxu0 0.0
    %445 = vmatpush2.msra.mxu0 0.0
    %446 = vmatprep.subr.mxu0 0.0
    %447 = vmatpush2.msra.mxu0 0.0
    %448 = vmatprep.subr.mxu0 0.0
    %449 = vmatpush2.msra.mxu0 0.0
    %450 = vmatprep.subr.mxu0 0.0
    %451 = vmatpush2.msra.mxu0 0.0
    %452 = vmatprep.mubr.f32.mxu0 0.0
    %453 = vmatmul.mubr.f32.gmra.mxu0 %v380
    %v454 = vpop.f32.mrf.mxu0
    %v455 = vadd.f32 0.0, %v454
    %v456 = vpop.f32.mrf.mxu0
    %457 = vmatprep.mubr.f32.mxu0 0.0
    %458 = vmatmul.mubr.f32.gmra.mxu0 %v383
    %v459 = vpop.f32.mrf.mxu0
    %v460 = vadd.f32 0.0, %v459
    %v461 = vpop.f32.mrf.mxu0
    %462 = vmatprep.mubr.f32.mxu0 0.0
    %463 = vmatmul.mubr.f32.gmra.mxu0 %v386
    %v464 = vpop.f32.mrf.mxu0
    %v465 = vadd.f32 0.0, %v464
    %v466 = vpop.f32.mrf.mxu0
    %467 = vdwg.mxu0
    %v469 = vsel %vm120, %v465, 0
    %471 = vmatprep.subr.mxu0 0.0
    %472 = vmatpush1.msra.mxu0 0.0
    %473 = vmatprep.subr.mxu0 0.0
    %474 = vmatpush1.msra.mxu0 0.0
    %475 = vmatprep.subr.mxu0 0.0
    %476 = vmatpush1.msra.mxu0 0.0
    %477 = vmatprep.subr.mxu0 0.0
    %478 = vmatpush1.msra.mxu0 0.0
    %479 = vmatprep.subr.mxu0 0.0
    %480 = vmatpush1.msra.mxu0 0.0
    %481 = vmatprep.subr.mxu0 0.0
    %482 = vmatpush1.msra.mxu0 0.0
    %483 = vmatprep.subr.mxu0 0.0
    %484 = vmatpush1.msra.mxu0 0.0
    %485 = vmatprep.subr.mxu0 0.0
    %486 = vmatpush1.msra.mxu0 0.0
    %487 = vmatprep.subr.mxu0 0.0
    %488 = vmatpush1.msra.mxu0 0.0
    %489 = vmatprep.subr.mxu0 0.0
    %490 = vmatpush1.msra.mxu0 0.0
    %491 = vmatprep.subr.mxu0 0.0
    %492 = vmatpush1.msra.mxu0 0.0
    %493 = vmatprep.subr.mxu0 0.0
    %494 = vmatpush1.msra.mxu0 0.0
    %495 = vmatprep.subr.mxu0 0.0
    %496 = vmatpush1.msra.mxu0 0.0
    %497 = vmatprep.subr.mxu0 0.0
    %498 = vmatpush1.msra.mxu0 %v469
    %499 = vmatprep.subr.mxu0 0.0
    %500 = vmatpush1.msra.mxu0 %v460
    %501 = vmatprep.subr.mxu0 0.0
    %502 = vmatpush1.msra.mxu0 %v455
    %503 = vmatprep.subr.mxu0 0.0
    %504 = vmatpush2.msra.mxu0 0.0
    %505 = vmatprep.subr.mxu0 0.0
    %506 = vmatpush2.msra.mxu0 0.0
    %507 = vmatprep.subr.mxu0 0.0
    %508 = vmatpush2.msra.mxu0 0.0
    %509 = vmatprep.subr.mxu0 0.0
    %510 = vmatpush2.msra.mxu0 0.0
    %511 = vmatprep.subr.mxu0 0.0
    %512 = vmatpush2.msra.mxu0 0.0
    %513 = vmatprep.subr.mxu0 0.0
    %514 = vmatpush2.msra.mxu0 0.0
    %515 = vmatprep.subr.mxu0 0.0
    %516 = vmatpush2.msra.mxu0 0.0
    %517 = vmatprep.subr.mxu0 0.0
    %518 = vmatpush2.msra.mxu0 0.0
    %519 = vmatprep.subr.mxu0 0.0
    %520 = vmatpush2.msra.mxu0 0.0
    %521 = vmatprep.subr.mxu0 0.0
    %522 = vmatpush2.msra.mxu0 0.0
    %523 = vmatprep.subr.mxu0 0.0
    %524 = vmatpush2.msra.mxu0 0.0
    %525 = vmatprep.subr.mxu0 0.0
    %526 = vmatpush2.msra.mxu0 0.0
    %527 = vmatprep.subr.mxu0 0.0
    %528 = vmatpush2.msra.mxu0 0.0
    %529 = vmatprep.subr.mxu0 0.0
    %530 = vmatpush2.msra.mxu0 0.0
    %531 = vmatprep.subr.mxu0 0.0
    %532 = vmatpush2.msra.mxu0 0.0
    %533 = vmatprep.subr.mxu0 0.0
    %534 = vmatpush2.msra.mxu0 0.0
    %535 = vmatprep.mubr.f32.mxu0 0.0
    %536 = vmatmul.mubr.f32.gmra.mxu0 %v115
    %v537 = vpop.f32.mrf.mxu0
    %v538 = vadd.f32 0.0, %v537
    %v539 = vpop.f32.mrf.mxu0
    %540 = vmatprep.mubr.f32.mxu0 0.0
    %541 = vmatmul.mubr.f32.gmra.mxu0 %v118
    %v542 = vpop.f32.mrf.mxu0
    %v543 = vadd.f32 0.0, %v542
    %v544 = vpop.f32.mrf.mxu0
    %545 = vdwg.mxu0
    %s546 = scalar_lea.vmem [#allocation2], 32
    %547 = vst [vmem:[%s546] sm:$0xff] %v538
    %548 = vst [vmem:[%s546 + $0x8] sm:$0xff] %v543
    %s549 = scalar_lea.vmem %s0, 72
    %v550 = vld [vmem:[%s549] sm:$0xff]
    %v551 = vld [vmem:[%s549 + $0x8] sm:$0xff]
    %v552 = vld [vmem:[%s549 + $0x10] sm:$0xf]
    %v554 = vsel %vm23, %v550, 0
    %v557 = vsel %vm23, %v551, 0
    %v560 = vsel %vm23, %v552, 0
    %562 = vmatprep.subr.mxu0 0.0
    %563 = vmatpush1.msra.mxu0 0.0
    %564 = vmatprep.subr.mxu0 0.0
    %565 = vmatpush1.msra.mxu0 0.0
    %566 = vmatprep.subr.mxu0 0.0
    %567 = vmatpush1.msra.mxu0 0.0
    %568 = vmatprep.subr.mxu0 0.0
    %569 = vmatpush1.msra.mxu0 0.0
    %570 = vmatprep.subr.mxu0 0.0
    %571 = vmatpush1.msra.mxu0 0.0
    %572 = vmatprep.subr.mxu0 0.0
    %573 = vmatpush1.msra.mxu0 0.0
    %574 = vmatprep.subr.mxu0 0.0
    %575 = vmatpush1.msra.mxu0 0.0
    %576 = vmatprep.subr.mxu0 0.0
    %577 = vmatpush1.msra.mxu0 0.0
    %578 = vmatprep.subr.mxu0 0.0
    %579 = vmatpush1.msra.mxu0 0.0
    %580 = vmatprep.subr.mxu0 0.0
    %581 = vmatpush1.msra.mxu0 0.0
    %582 = vmatprep.subr.mxu0 0.0
    %583 = vmatpush1.msra.mxu0 0.0
    %584 = vmatprep.subr.mxu0 0.0
    %585 = vmatpush1.msra.mxu0 0.0
    %586 = vmatprep.subr.mxu0 0.0
    %587 = vmatpush1.msra.mxu0 0.0
    %588 = vmatprep.subr.mxu0 0.0
    %589 = vmatpush1.msra.mxu0 %v19
    %590 = vmatprep.subr.mxu0 0.0
    %591 = vmatpush1.msra.mxu0 %v18
    %592 = vmatprep.subr.mxu0 0.0
    %593 = vmatpush1.msra.mxu0 %v17
    %594 = vmatprep.subr.mxu0 0.0
    %595 = vmatpush2.msra.mxu0 0.0
    %596 = vmatprep.subr.mxu0 0.0
    %597 = vmatpush2.msra.mxu0 0.0
    %598 = vmatprep.subr.mxu0 0.0
    %599 = vmatpush2.msra.mxu0 0.0
    %600 = vmatprep.subr.mxu0 0.0
    %601 = vmatpush2.msra.mxu0 0.0
    %602 = vmatprep.subr.mxu0 0.0
    %603 = vmatpush2.msra.mxu0 0.0
    %604 = vmatprep.subr.mxu0 0.0
    %605 = vmatpush2.msra.mxu0 0.0
    %606 = vmatprep.subr.mxu0 0.0
    %607 = vmatpush2.msra.mxu0 0.0
    %608 = vmatprep.subr.mxu0 0.0
    %609 = vmatpush2.msra.mxu0 0.0
    %610 = vmatprep.subr.mxu0 0.0
    %611 = vmatpush2.msra.mxu0 0.0
    %612 = vmatprep.subr.mxu0 0.0
    %613 = vmatpush2.msra.mxu0 0.0
    %614 = vmatprep.subr.mxu0 0.0
    %615 = vmatpush2.msra.mxu0 0.0
    %616 = vmatprep.subr.mxu0 0.0
    %617 = vmatpush2.msra.mxu0 0.0
    %618 = vmatprep.subr.mxu0 0.0
    %619 = vmatpush2.msra.mxu0 0.0
    %620 = vmatprep.subr.mxu0 0.0
    %621 = vmatpush2.msra.mxu0 0.0
    %622 = vmatprep.subr.mxu0 0.0
    %623 = vmatpush2.msra.mxu0 0.0
    %624 = vmatprep.subr.mxu0 0.0
    %625 = vmatpush2.msra.mxu0 0.0
    %626 = vmatprep.mubr.f32.mxu0 0.0
    %627 = vmatmul.mubr.f32.gmra.mxu0 %v554
    %v628 = vpop.f32.mrf.mxu0
    %v629 = vadd.f32 0.0, %v628
    %v630 = vpop.f32.mrf.mxu0
    %631 = vmatprep.mubr.f32.mxu0 0.0
    %632 = vmatmul.mubr.f32.gmra.mxu0 %v557
    %v633 = vpop.f32.mrf.mxu0
    %v634 = vadd.f32 0.0, %v633
    %v635 = vpop.f32.mrf.mxu0
    %636 = vmatprep.mubr.f32.mxu0 0.0
    %637 = vmatmul.mubr.f32.gmra.mxu0 %v560
    %v638 = vpop.f32.mrf.mxu0
    %v639 = vadd.f32 0.0, %v638
    %v640 = vpop.f32.mrf.mxu0
    %641 = vdwg.mxu0
    %v643 = vsel %vm120, %v639, 0
    %645 = vmatprep.subr.mxu0 0.0
    %646 = vmatpush1.msra.mxu0 0.0
    %647 = vmatprep.subr.mxu0 0.0
    %648 = vmatpush1.msra.mxu0 0.0
    %649 = vmatprep.subr.mxu0 0.0
    %650 = vmatpush1.msra.mxu0 0.0
    %651 = vmatprep.subr.mxu0 0.0
    %652 = vmatpush1.msra.mxu0 0.0
    %653 = vmatprep.subr.mxu0 0.0
    %654 = vmatpush1.msra.mxu0 0.0
    %655 = vmatprep.subr.mxu0 0.0
    %656 = vmatpush1.msra.mxu0 0.0
    %657 = vmatprep.subr.mxu0 0.0
    %658 = vmatpush1.msra.mxu0 0.0
    %659 = vmatprep.subr.mxu0 0.0
    %660 = vmatpush1.msra.mxu0 0.0
    %661 = vmatprep.subr.mxu0 0.0
    %662 = vmatpush1.msra.mxu0 0.0
    %663 = vmatprep.subr.mxu0 0.0
    %664 = vmatpush1.msra.mxu0 0.0
    %665 = vmatprep.subr.mxu0 0.0
    %666 = vmatpush1.msra.mxu0 0.0
    %667 = vmatprep.subr.mxu0 0.0
    %668 = vmatpush1.msra.mxu0 0.0
    %669 = vmatprep.subr.mxu0 0.0
    %670 = vmatpush1.msra.mxu0 0.0
    %671 = vmatprep.subr.mxu0 0.0
    %672 = vmatpush1.msra.mxu0 %v643
    %673 = vmatprep.subr.mxu0 0.0
    %674 = vmatpush1.msra.mxu0 %v634
    %675 = vmatprep.subr.mxu0 0.0
    %676 = vmatpush1.msra.mxu0 %v629
    %677 = vmatprep.subr.mxu0 0.0
    %678 = vmatpush2.msra.mxu0 0.0
    %679 = vmatprep.subr.mxu0 0.0
    %680 = vmatpush2.msra.mxu0 0.0
    %681 = vmatprep.subr.mxu0 0.0
    %682 = vmatpush2.msra.mxu0 0.0
    %683 = vmatprep.subr.mxu0 0.0
    %684 = vmatpush2.msra.mxu0 0.0
    %685 = vmatprep.subr.mxu0 0.0
    %686 = vmatpush2.msra.mxu0 0.0
    %687 = vmatprep.subr.mxu0 0.0
    %688 = vmatpush2.msra.mxu0 0.0
    %689 = vmatprep.subr.mxu0 0.0
    %690 = vmatpush2.msra.mxu0 0.0
    %691 = vmatprep.subr.mxu0 0.0
    %692 = vmatpush2.msra.mxu0 0.0
    %693 = vmatprep.subr.mxu0 0.0
    %694 = vmatpush2.msra.mxu0 0.0
    %695 = vmatprep.subr.mxu0 0.0
    %696 = vmatpush2.msra.mxu0 0.0
    %697 = vmatprep.subr.mxu0 0.0
    %698 = vmatpush2.msra.mxu0 0.0
    %699 = vmatprep.subr.mxu0 0.0
    %700 = vmatpush2.msra.mxu0 0.0
    %701 = vmatprep.subr.mxu0 0.0
    %702 = vmatpush2.msra.mxu0 0.0
    %703 = vmatprep.subr.mxu0 0.0
    %704 = vmatpush2.msra.mxu0 0.0
    %705 = vmatprep.subr.mxu0 0.0
    %706 = vmatpush2.msra.mxu0 0.0
    %707 = vmatprep.subr.mxu0 0.0
    %708 = vmatpush2.msra.mxu0 0.0
    %709 = vmatprep.mubr.f32.mxu0 0.0
    %710 = vmatmul.mubr.f32.gmra.mxu0 %v115
    %v711 = vpop.f32.mrf.mxu0
    %v712 = vadd.f32 0.0, %v711
    %v713 = vpop.f32.mrf.mxu0
    %714 = vmatprep.mubr.f32.mxu0 0.0
    %715 = vmatmul.mubr.f32.gmra.mxu0 %v118
    %v716 = vpop.f32.mrf.mxu0
    %v717 = vadd.f32 0.0, %v716
    %v718 = vpop.f32.mrf.mxu0
    %719 = vdwg.mxu0
    %s720 = scalar_lea.vmem [#allocation2], 48
    %721 = vst [vmem:[%s720] sm:$0xff] %v712
    %722 = vst [vmem:[%s720 + $0x8] sm:$0xff] %v717
    %s723 = scalar_lea.vmem %s0, 96
    %v724 = vld [vmem:[%s723] sm:$0xff]
    %v725 = vld [vmem:[%s723 + $0x8] sm:$0xff]
    %v726 = vld [vmem:[%s723 + $0x10] sm:$0xf]
    %v728 = vsel %vm23, %v724, 0
    %v731 = vsel %vm23, %v725, 0
    %v734 = vsel %vm23, %v726, 0
    %736 = vmatprep.subr.mxu0 0.0
    %737 = vmatpush1.msra.mxu0 0.0
    %738 = vmatprep.subr.mxu0 0.0
    %739 = vmatpush1.msra.mxu0 0.0
    %740 = vmatprep.subr.mxu0 0.0
    %741 = vmatpush1.msra.mxu0 0.0
    %742 = vmatprep.subr.mxu0 0.0
    %743 = vmatpush1.msra.mxu0 0.0
    %744 = vmatprep.subr.mxu0 0.0
    %745 = vmatpush1.msra.mxu0 0.0
    %746 = vmatprep.subr.mxu0 0.0
    %747 = vmatpush1.msra.mxu0 0.0
    %748 = vmatprep.subr.mxu0 0.0
    %749 = vmatpush1.msra.mxu0 0.0
    %750 = vmatprep.subr.mxu0 0.0
    %751 = vmatpush1.msra.mxu0 0.0
    %752 = vmatprep.subr.mxu0 0.0
    %753 = vmatpush1.msra.mxu0 0.0
    %754 = vmatprep.subr.mxu0 0.0
    %755 = vmatpush1.msra.mxu0 0.0
    %756 = vmatprep.subr.mxu0 0.0
    %757 = vmatpush1.msra.mxu0 0.0
    %758 = vmatprep.subr.mxu0 0.0
    %759 = vmatpush1.msra.mxu0 0.0
    %760 = vmatprep.subr.mxu0 0.0
    %761 = vmatpush1.msra.mxu0 0.0
    %762 = vmatprep.subr.mxu0 0.0
    %763 = vmatpush1.msra.mxu0 %v19
    %764 = vmatprep.subr.mxu0 0.0
    %765 = vmatpush1.msra.mxu0 %v18
    %766 = vmatprep.subr.mxu0 0.0
    %767 = vmatpush1.msra.mxu0 %v17
    %768 = vmatprep.subr.mxu0 0.0
    %769 = vmatpush2.msra.mxu0 0.0
    %770 = vmatprep.subr.mxu0 0.0
    %771 = vmatpush2.msra.mxu0 0.0
    %772 = vmatprep.subr.mxu0 0.0
    %773 = vmatpush2.msra.mxu0 0.0
    %774 = vmatprep.subr.mxu0 0.0
    %775 = vmatpush2.msra.mxu0 0.0
    %776 = vmatprep.subr.mxu0 0.0
    %777 = vmatpush2.msra.mxu0 0.0
    %778 = vmatprep.subr.mxu0 0.0
    %779 = vmatpush2.msra.mxu0 0.0
    %780 = vmatprep.subr.mxu0 0.0
    %781 = vmatpush2.msra.mxu0 0.0
    %782 = vmatprep.subr.mxu0 0.0
    %783 = vmatpush2.msra.mxu0 0.0
    %784 = vmatprep.subr.mxu0 0.0
    %785 = vmatpush2.msra.mxu0 0.0
    %786 = vmatprep.subr.mxu0 0.0
    %787 = vmatpush2.msra.mxu0 0.0
    %788 = vmatprep.subr.mxu0 0.0
    %789 = vmatpush2.msra.mxu0 0.0
    %790 = vmatprep.subr.mxu0 0.0
    %791 = vmatpush2.msra.mxu0 0.0
    %792 = vmatprep.subr.mxu0 0.0
    %793 = vmatpush2.msra.mxu0 0.0
    %794 = vmatprep.subr.mxu0 0.0
    %795 = vmatpush2.msra.mxu0 0.0
    %796 = vmatprep.subr.mxu0 0.0
    %797 = vmatpush2.msra.mxu0 0.0
    %798 = vmatprep.subr.mxu0 0.0
    %799 = vmatpush2.msra.mxu0 0.0
    %800 = vmatprep.mubr.f32.mxu0 0.0
    %801 = vmatmul.mubr.f32.gmra.mxu0 %v728
    %v802 = vpop.f32.mrf.mxu0
    %v803 = vadd.f32 0.0, %v802
    %v804 = vpop.f32.mrf.mxu0
    %805 = vmatprep.mubr.f32.mxu0 0.0
    %806 = vmatmul.mubr.f32.gmra.mxu0 %v731
    %v807 = vpop.f32.mrf.mxu0
    %v808 = vadd.f32 0.0, %v807
    %v809 = vpop.f32.mrf.mxu0
    %810 = vmatprep.mubr.f32.mxu0 0.0
    %811 = vmatmul.mubr.f32.gmra.mxu0 %v734
    %v812 = vpop.f32.mrf.mxu0
    %v813 = vadd.f32 0.0, %v812
    %v814 = vpop.f32.mrf.mxu0
    %815 = vdwg.mxu0
    %v817 = vsel %vm120, %v813, 0
    %819 = vmatprep.subr.mxu0 0.0
    %820 = vmatpush1.msra.mxu0 0.0
    %821 = vmatprep.subr.mxu0 0.0
    %822 = vmatpush1.msra.mxu0 0.0
    %823 = vmatprep.subr.mxu0 0.0
    %824 = vmatpush1.msra.mxu0 0.0
    %825 = vmatprep.subr.mxu0 0.0
    %826 = vmatpush1.msra.mxu0 0.0
    %827 = vmatprep.subr.mxu0 0.0
    %828 = vmatpush1.msra.mxu0 0.0
    %829 = vmatprep.subr.mxu0 0.0
    %830 = vmatpush1.msra.mxu0 0.0
    %831 = vmatprep.subr.mxu0 0.0
    %832 = vmatpush1.msra.mxu0 0.0
    %833 = vmatprep.subr.mxu0 0.0
    %834 = vmatpush1.msra.mxu0 0.0
    %835 = vmatprep.subr.mxu0 0.0
    %836 = vmatpush1.msra.mxu0 0.0
    %837 = vmatprep.subr.mxu0 0.0
    %838 = vmatpush1.msra.mxu0 0.0
    %839 = vmatprep.subr.mxu0 0.0
    %840 = vmatpush1.msra.mxu0 0.0
    %841 = vmatprep.subr.mxu0 0.0
    %842 = vmatpush1.msra.mxu0 0.0
    %843 = vmatprep.subr.mxu0 0.0
    %844 = vmatpush1.msra.mxu0 0.0
    %845 = vmatprep.subr.mxu0 0.0
    %846 = vmatpush1.msra.mxu0 %v817
    %847 = vmatprep.subr.mxu0 0.0
    %848 = vmatpush1.msra.mxu0 %v808
    %849 = vmatprep.subr.mxu0 0.0
    %850 = vmatpush1.msra.mxu0 %v803
    %851 = vmatprep.subr.mxu0 0.0
    %852 = vmatpush2.msra.mxu0 0.0
    %853 = vmatprep.subr.mxu0 0.0
    %854 = vmatpush2.msra.mxu0 0.0
    %855 = vmatprep.subr.mxu0 0.0
    %856 = vmatpush2.msra.mxu0 0.0
    %857 = vmatprep.subr.mxu0 0.0
    %858 = vmatpush2.msra.mxu0 0.0
    %859 = vmatprep.subr.mxu0 0.0
    %860 = vmatpush2.msra.mxu0 0.0
    %861 = vmatprep.subr.mxu0 0.0
    %862 = vmatpush2.msra.mxu0 0.0
    %863 = vmatprep.subr.mxu0 0.0
    %864 = vmatpush2.msra.mxu0 0.0
    %865 = vmatprep.subr.mxu0 0.0
    %866 = vmatpush2.msra.mxu0 0.0
    %867 = vmatprep.subr.mxu0 0.0
    %868 = vmatpush2.msra.mxu0 0.0
    %869 = vmatprep.subr.mxu0 0.0
    %870 = vmatpush2.msra.mxu0 0.0
    %871 = vmatprep.subr.mxu0 0.0
    %872 = vmatpush2.msra.mxu0 0.0
    %873 = vmatprep.subr.mxu0 0.0
    %874 = vmatpush2.msra.mxu0 0.0
    %875 = vmatprep.subr.mxu0 0.0
    %876 = vmatpush2.msra.mxu0 0.0
    %877 = vmatprep.subr.mxu0 0.0
    %878 = vmatpush2.msra.mxu0 0.0
    %879 = vmatprep.subr.mxu0 0.0
    %880 = vmatpush2.msra.mxu0 0.0
    %881 = vmatprep.subr.mxu0 0.0
    %882 = vmatpush2.msra.mxu0 0.0
    %883 = vmatprep.mubr.f32.mxu0 0.0
    %884 = vmatmul.mubr.f32.gmra.mxu0 %v115
    %v885 = vpop.f32.mrf.mxu0
    %v886 = vadd.f32 0.0, %v885
    %v887 = vpop.f32.mrf.mxu0
    %888 = vmatprep.mubr.f32.mxu0 0.0
    %889 = vmatmul.mubr.f32.gmra.mxu0 %v118
    %v890 = vpop.f32.mrf.mxu0
    %v891 = vadd.f32 0.0, %v890
    %v892 = vpop.f32.mrf.mxu0
    %893 = vdwg.mxu0
    %s894 = scalar_lea.vmem [#allocation2], 64
    %895 = vst [vmem:[%s894] sm:$0xff] %v886
    %896 = vst [vmem:[%s894 + $0x8] sm:$0xff] %v891
    %s897 = scalar_lea.vmem %s0, 120
    %v898 = vld [vmem:[%s897] sm:$0xff]
    %v899 = vld [vmem:[%s897 + $0x8] sm:$0xff]
    %v900 = vld [vmem:[%s897 + $0x10] sm:$0xf]
    %v902 = vsel %vm23, %v898, 0
    %v905 = vsel %vm23, %v899, 0
    %v908 = vsel %vm23, %v900, 0
    %910 = vmatprep.subr.mxu0 0.0
    %911 = vmatpush1.msra.mxu0 0.0
    %912 = vmatprep.subr.mxu0 0.0
    %913 = vmatpush1.msra.mxu0 0.0
    %914 = vmatprep.subr.mxu0 0.0
    %915 = vmatpush1.msra.mxu0 0.0
    %916 = vmatprep.subr.mxu0 0.0
    %917 = vmatpush1.msra.mxu0 0.0
    %918 = vmatprep.subr.mxu0 0.0
    %919 = vmatpush1.msra.mxu0 0.0
    %920 = vmatprep.subr.mxu0 0.0
    %921 = vmatpush1.msra.mxu0 0.0
    %922 = vmatprep.subr.mxu0 0.0
    %923 = vmatpush1.msra.mxu0 0.0
    %924 = vmatprep.subr.mxu0 0.0
    %925 = vmatpush1.msra.mxu0 0.0
    %926 = vmatprep.subr.mxu0 0.0
    %927 = vmatpush1.msra.mxu0 0.0
    %928 = vmatprep.subr.mxu0 0.0
    %929 = vmatpush1.msra.mxu0 0.0
    %930 = vmatprep.subr.mxu0 0.0
    %931 = vmatpush1.msra.mxu0 0.0
    %932 = vmatprep.subr.mxu0 0.0
    %933 = vmatpush1.msra.mxu0 0.0
    %934 = vmatprep.subr.mxu0 0.0
    %935 = vmatpush1.msra.mxu0 0.0
    %936 = vmatprep.subr.mxu0 0.0
    %937 = vmatpush1.msra.mxu0 %v19
    %938 = vmatprep.subr.mxu0 0.0
    %939 = vmatpush1.msra.mxu0 %v18
    %940 = vmatprep.subr.mxu0 0.0
    %941 = vmatpush1.msra.mxu0 %v17
    %942 = vmatprep.subr.mxu0 0.0
    %943 = vmatpush2.msra.mxu0 0.0
    %944 = vmatprep.subr.mxu0 0.0
    %945 = vmatpush2.msra.mxu0 0.0
    %946 = vmatprep.subr.mxu0 0.0
    %947 = vmatpush2.msra.mxu0 0.0
    %948 = vmatprep.subr.mxu0 0.0
    %949 = vmatpush2.msra.mxu0 0.0
    %950 = vmatprep.subr.mxu0 0.0
    %951 = vmatpush2.msra.mxu0 0.0
    %952 = vmatprep.subr.mxu0 0.0
    %953 = vmatpush2.msra.mxu0 0.0
    %954 = vmatprep.subr.mxu0 0.0
    %955 = vmatpush2.msra.mxu0 0.0
    %956 = vmatprep.subr.mxu0 0.0
    %957 = vmatpush2.msra.mxu0 0.0
    %958 = vmatprep.subr.mxu0 0.0
    %959 = vmatpush2.msra.mxu0 0.0
    %960 = vmatprep.subr.mxu0 0.0
    %961 = vmatpush2.msra.mxu0 0.0
    %962 = vmatprep.subr.mxu0 0.0
    %963 = vmatpush2.msra.mxu0 0.0
    %964 = vmatprep.subr.mxu0 0.0
    %965 = vmatpush2.msra.mxu0 0.0
    %966 = vmatprep.subr.mxu0 0.0
    %967 = vmatpush2.msra.mxu0 0.0
    %968 = vmatprep.subr.mxu0 0.0
    %969 = vmatpush2.msra.mxu0 0.0
    %970 = vmatprep.subr.mxu0 0.0
    %971 = vmatpush2.msra.mxu0 0.0
    %972 = vmatprep.subr.mxu0 0.0
    %973 = vmatpush2.msra.mxu0 0.0
    %974 = vmatprep.mubr.f32.mxu0 0.0
    %975 = vmatmul.mubr.f32.gmra.mxu0 %v902
    %v976 = vpop.f32.mrf.mxu0
    %v977 = vadd.f32 0.0, %v976
    %v978 = vpop.f32.mrf.mxu0
    %979 = vmatprep.mubr.f32.mxu0 0.0
    %980 = vmatmul.mubr.f32.gmra.mxu0 %v905
    %v981 = vpop.f32.mrf.mxu0
    %v982 = vadd.f32 0.0, %v981
    %v983 = vpop.f32.mrf.mxu0
    %984 = vmatprep.mubr.f32.mxu0 0.0
    %985 = vmatmul.mubr.f32.gmra.mxu0 %v908
    %v986 = vpop.f32.mrf.mxu0
    %v987 = vadd.f32 0.0, %v986
    %v988 = vpop.f32.mrf.mxu0
    %989 = vdwg.mxu0
    %v991 = vsel %vm120, %v987, 0
    %993 = vmatprep.subr.mxu0 0.0
    %994 = vmatpush1.msra.mxu0 0.0
    %995 = vmatprep.subr.mxu0 0.0
    %996 = vmatpush1.msra.mxu0 0.0
    %997 = vmatprep.subr.mxu0 0.0
    %998 = vmatpush1.msra.mxu0 0.0
    %999 = vmatprep.subr.mxu0 0.0
    %1000 = vmatpush1.msra.mxu0 0.0
    %1001 = vmatprep.subr.mxu0 0.0
    %1002 = vmatpush1.msra.mxu0 0.0
    %1003 = vmatprep.subr.mxu0 0.0
    %1004 = vmatpush1.msra.mxu0 0.0
    %1005 = vmatprep.subr.mxu0 0.0
    %1006 = vmatpush1.msra.mxu0 0.0
    %1007 = vmatprep.subr.mxu0 0.0
    %1008 = vmatpush1.msra.mxu0 0.0
    %1009 = vmatprep.subr.mxu0 0.0
    %1010 = vmatpush1.msra.mxu0 0.0
    %1011 = vmatprep.subr.mxu0 0.0
    %1012 = vmatpush1.msra.mxu0 0.0
    %1013 = vmatprep.subr.mxu0 0.0
    %1014 = vmatpush1.msra.mxu0 0.0
    %1015 = vmatprep.subr.mxu0 0.0
    %1016 = vmatpush1.msra.mxu0 0.0
    %1017 = vmatprep.subr.mxu0 0.0
    %1018 = vmatpush1.msra.mxu0 0.0
    %1019 = vmatprep.subr.mxu0 0.0
    %1020 = vmatpush1.msra.mxu0 %v991
    %1021 = vmatprep.subr.mxu0 0.0
    %1022 = vmatpush1.msra.mxu0 %v982
    %1023 = vmatprep.subr.mxu0 0.0
    %1024 = vmatpush1.msra.mxu0 %v977
    %1025 = vmatprep.subr.mxu0 0.0
    %1026 = vmatpush2.msra.mxu0 0.0
    %1027 = vmatprep.subr.mxu0 0.0
    %1028 = vmatpush2.msra.mxu0 0.0
    %1029 = vmatprep.subr.mxu0 0.0
    %1030 = vmatpush2.msra.mxu0 0.0
    %1031 = vmatprep.subr.mxu0 0.0
    %1032 = vmatpush2.msra.mxu0 0.0
    %1033 = vmatprep.subr.mxu0 0.0
    %1034 = vmatpush2.msra.mxu0 0.0
    %1035 = vmatprep.subr.mxu0 0.0
    %1036 = vmatpush2.msra.mxu0 0.0
    %1037 = vmatprep.subr.mxu0 0.0
    %1038 = vmatpush2.msra.mxu0 0.0
    %1039 = vmatprep.subr.mxu0 0.0
    %1040 = vmatpush2.msra.mxu0 0.0
    %1041 = vmatprep.subr.mxu0 0.0
    %1042 = vmatpush2.msra.mxu0 0.0
    %1043 = vmatprep.subr.mxu0 0.0
    %1044 = vmatpush2.msra.mxu0 0.0
    %1045 = vmatprep.subr.mxu0 0.0
    %1046 = vmatpush2.msra.mxu0 0.0
    %1047 = vmatprep.subr.mxu0 0.0
    %1048 = vmatpush2.msra.mxu0 0.0
    %1049 = vmatprep.subr.mxu0 0.0
    %1050 = vmatpush2.msra.mxu0 0.0
    %1051 = vmatprep.subr.mxu0 0.0
    %1052 = vmatpush2.msra.mxu0 0.0
    %1053 = vmatprep.subr.mxu0 0.0
    %1054 = vmatpush2.msra.mxu0 0.0
    %1055 = vmatprep.subr.mxu0 0.0
    %1056 = vmatpush2.msra.mxu0 0.0
    %1057 = vmatprep.mubr.f32.mxu0 0.0
    %1058 = vmatmul.mubr.f32.gmra.mxu0 %v115
    %v1059 = vpop.f32.mrf.mxu0
    %v1060 = vadd.f32 0.0, %v1059
    %v1061 = vpop.f32.mrf.mxu0
    %1062 = vmatprep.mubr.f32.mxu0 0.0
    %1063 = vmatmul.mubr.f32.gmra.mxu0 %v118
    %v1064 = vpop.f32.mrf.mxu0
    %v1065 = vadd.f32 0.0, %v1064
    %v1066 = vpop.f32.mrf.mxu0
    %1067 = vdwg.mxu0
    %s1068 = scalar_lea.vmem [#allocation2], 80
    %1069 = vst [vmem:[%s1068] sm:$0xff] %v1060
    %1070 = vst [vmem:[%s1068 + $0x8] sm:$0xff] %v1065
    // Predicated region
    $region14: #{fn.1} parent=1 // pred_check
      _
    $region15: #{fn.1} parent=1 // pred_check_branch
      %1072 = sbr.rel (0) target = $region17
    $region16: #{fn.1} parent=1 // pred_region
      %s1074 = ssub.s32 1536, 1536
      %1075 = vsyncadd [#allocation3], %s1074
      %s1076 = sshll.u32 [#allocation2], 4
      %s1077 = int_to_ptr.vmem [resolvable:$true] %s1076
      %1082 = dma.vmem_to_hbm [thread:$0]  %s1077, 1536, %s3, [#allocation3], 128, 128, 8
    $region17: #{fn.1} parent=1 // pred_fallthru
      _
    // Predicated region
    $region18: #{fn.1} parent=1 // pred_check
      _
    $region19: #{fn.1} parent=1 // pred_check_branch
      %1084 = sbr.rel (0) target = $region21
    $region20: #{fn.1} parent=1 // pred_region
      %1085 = dma.done [#allocation3], 1536
    $region21: #{fn.1} parent=1 // pred_fallthru
      _
    %1086 = vsyncpa [#allocation3], 1

</llo_original>
